<compile_context>
chip_gen: v7x
topology: tpu7x:2x2x1
jax: 0.10.0
libtpu: 0.0.40
codegen_flags: <defaults>
</compile_context>

<pallas_src>
import math
import functools

import jax
import jax.numpy as jnp
from jax.experimental import pallas as pl
from jax.experimental.pallas import tpu as pltpu


# ----------------------------------------------------------------------------
# Kernel 1: per-(batch, head) fused qkv projection + scaled-dot-product attn.
# ----------------------------------------------------------------------------
def _head_attention_kernel(x_ref, w_ref, b_ref, o_ref, *, head_dim, scale):
    x = x_ref[0]          # (S, input_dim)      bf16
    w = w_ref[0]          # (input_dim, 3*Dh)   bf16  (this head's qkv columns)
    bias = b_ref[0]       # (1, 3*Dh)           f32

    # This head's q,k,v projection on the MXU (bf16 in, f32 accumulate).
    qkv = jnp.dot(x, w, preferred_element_type=jnp.float32) + bias   # (S, 3*Dh)

    q = (qkv[:, :head_dim] * scale).astype(jnp.bfloat16)   # fold 1/sqrt(d_k)
    k = qkv[:, head_dim:2 * head_dim].astype(jnp.bfloat16)
    v = qkv[:, 2 * head_dim:].astype(jnp.bfloat16)

    # q @ k^T via transposed contraction (no materialized k.T), f32 scores.
    scores = jax.lax.dot_general(
        q, k, dimension_numbers=(((1,), (1,)), ((), ())),
        preferred_element_type=jnp.float32)                 # (S, S)

    m = jnp.max(scores, axis=-1, keepdims=True)
    e = jnp.exp(scores - m)                                  # f32 EUP exp
    denom = jnp.sum(e, axis=-1, keepdims=True)
    # Approx EUP reciprocal (~2^-12 rel. error) — covered by the bf16-level
    # test tolerance; drop approx=True if exact softmax is required.
    probs = (e * pl.reciprocal(denom, approx=True)).astype(jnp.bfloat16)

    out = jnp.dot(probs, v, preferred_element_type=jnp.float32)   # (S, Dh)
    o_ref[0, 0] = out.astype(o_ref.dtype)


def pallas_head_attention(x_bf16, w_heads, b_heads, head_dim):
    """x_bf16: (B, S, input_dim) bf16; w_heads: (H, input_dim, 3*Dh) bf16;
    b_heads: (H, 1, 3*Dh) f32  ->  (B, H, S, Dh) bf16."""
    B, S, input_dim = x_bf16.shape
    H = w_heads.shape[0]
    three_dh = 3 * head_dim
    scale = 1.0 / math.sqrt(head_dim)
    kernel = functools.partial(_head_attention_kernel,
                               head_dim=head_dim, scale=scale)

    flops = (2 * B * S * input_dim * H * three_dh          # qkv projection
             + 4 * B * H * S * S * head_dim)               # scores + attn@v
    bytes_accessed = (2 * B * S * input_dim                # x (bf16)
                      + 2 * B * H * input_dim * three_dh   # per-head weights
                      + 4 * H * three_dh                   # bias (f32)
                      + 2 * B * H * S * head_dim)          # output (bf16)

    return pl.pallas_call(
        kernel,
        out_shape=jax.ShapeDtypeStruct((B, H, S, head_dim), jnp.bfloat16),
        grid=(B, H),
        in_specs=[
            pl.BlockSpec((1, S, input_dim), lambda b, h: (b, 0, 0)),
            pl.BlockSpec((1, input_dim, three_dh), lambda b, h: (h, 0, 0)),
            pl.BlockSpec((1, 1, three_dh), lambda b, h: (h, 0, 0)),
        ],
        out_specs=pl.BlockSpec((1, 1, S, head_dim), lambda b, h: (b, h, 0, 0)),
        compiler_params=pltpu.CompilerParams(
            dimension_semantics=("parallel", "parallel"),
            vmem_limit_bytes=32 * 1024 * 1024),
        cost_estimate=pl.CostEstimate(
            flops=flops, transcendentals=B * H * S * S,
            bytes_accessed=bytes_accessed),
    )(x_bf16, w_heads, b_heads)


# ----------------------------------------------------------------------------
# Kernel 2: tiled linear  y = x @ W + b  (bf16 operands, f32 accumulation).
# ----------------------------------------------------------------------------
def _linear_kernel(x_ref, w_ref, b_ref, o_ref, acc_ref):
    @pl.when(pl.program_id(2) == 0)
    def _():
        acc_ref[...] = jnp.zeros_like(acc_ref)

    acc_ref[...] += jnp.dot(x_ref[...], w_ref[...],
                            preferred_element_type=jnp.float32)

    @pl.when(pl.program_id(2) == pl.num_programs(2) - 1)
    def _():
        o_ref[...] = (acc_ref[...] + b_ref[...]).astype(o_ref.dtype)


def _round_up(x, m):
    return ((x + m - 1) // m) * m


def pallas_linear(x2d, w, b, *, tm=512, tn=512, tk=512):
    """x2d: (M, K) bf16, w: (K, N) bf16, b: (N,) f32 -> (M, N) f32."""
    M, K = x2d.shape
    N = w.shape[1]

    # Ragged M (= B*S) is padded up to a tile multiple instead of degrading to
    # a whole-M block (keeps tiles bounded and MXU-aligned).
    tm_eff = min(tm, _round_up(M, 8))
    m_pad = _round_up(M, tm_eff)
    if m_pad != M:
        x2d = jnp.pad(x2d, ((0, m_pad - M), (0, 0)))
    # TODO(synk): pad ragged N/K too; d_model is 128-aligned in real models.
    tn_eff = tn if N % tn == 0 else N
    tk_eff = tk if K % tk == 0 else K
    grid = (m_pad // tm_eff, N // tn_eff, K // tk_eff)

    out = pl.pallas_call(
        _linear_kernel,
        out_shape=jax.ShapeDtypeStruct((m_pad, N), jnp.float32),
        grid_spec=pltpu.PrefetchScalarGridSpec(
            num_scalar_prefetch=0,
            grid=grid,
            in_specs=[pl.BlockSpec((tm_eff, tk_eff), lambda i, j, k: (i, k)),
                      pl.BlockSpec((tk_eff, tn_eff), lambda i, j, k: (k, j)),
                      pl.BlockSpec((1, tn_eff), lambda i, j, k: (0, j))],
            out_specs=pl.BlockSpec((tm_eff, tn_eff), lambda i, j, k: (i, j)),
            scratch_shapes=[pltpu.VMEM((tm_eff, tn_eff), jnp.float32)]),
        compiler_params=pltpu.CompilerParams(
            dimension_semantics=("parallel", "parallel", "arbitrary"),
            vmem_limit_bytes=32 * 1024 * 1024),
        cost_estimate=pl.CostEstimate(
            flops=2 * m_pad * N * K, transcendentals=0,
            bytes_accessed=2 * (m_pad * K + K * N) + 4 * (m_pad * N + N)),
    )(x2d, w, b.reshape(1, N))
    return out[:M] if m_pad != M else out


# ----------------------------------------------------------------------------
# MultiHeadAttention module (parameters held in a dict, init mimics nn.Linear)
# ----------------------------------------------------------------------------
def init_mha_params(key, input_dim, d_model):
    k1, k2, k3, k4 = jax.random.split(key, 4)
    bound_qkv = 1.0 / math.sqrt(input_dim)
    bound_out = 1.0 / math.sqrt(d_model)
    return {
        # stored as (in_features, out_features) for x @ W
        "qkv_w": jax.random.uniform(k1, (input_dim, 3 * d_model), jnp.float32,
                                    -bound_qkv, bound_qkv),
        "qkv_b": jax.random.uniform(k2, (3 * d_model,), jnp.float32,
                                    -bound_qkv, bound_qkv),
        "out_w": jax.random.uniform(k3, (d_model, d_model), jnp.float32,
                                    -bound_out, bound_out),
        "out_b": jax.random.uniform(k4, (d_model,), jnp.float32,
                                    -bound_out, bound_out),
    }


def multi_head_attention_forward(params, x, num_heads):
    B, S, input_dim = x.shape
    d_model = params["out_w"].shape[0]
    head_dim = d_model // num_heads

    # bf16 operand casts (accumulation stays f32 inside the kernels).
    x_bf16 = x.astype(jnp.bfloat16)
    # Head h's q,k,v use qkv_w columns [h*3*Dh, (h+1)*3*Dh) — regroup the
    # weight once so each grid step loads only its head's slice.
    w_heads = jnp.transpose(
        params["qkv_w"].reshape(input_dim, num_heads, 3 * head_dim),
        (1, 0, 2)).astype(jnp.bfloat16)                         # (H, in, 3*Dh)
    b_heads = params["qkv_b"].reshape(num_heads, 1, 3 * head_dim)  # f32

    # (B, H, S, Dh) bf16 per-head attention outputs.
    values = pallas_head_attention(x_bf16, w_heads, b_heads, head_dim)

    # Faithful to the PyTorch module: PLAIN reshape of the contiguous
    # (B, H, S, Dh) tensor to (B, S, H*Dh) — no head transpose (this mixes
    # heads and sequence positions exactly like the reference code).
    values_2d = values.reshape(B * S, num_heads * head_dim)

    out = pallas_linear(values_2d,
                        params["out_w"].astype(jnp.bfloat16),
                        params["out_b"])
    return out.reshape(B, S, d_model)


# ----------------------------------------------------------------------------
# Pure-JAX f32 reference (mirrors the PyTorch code) for a sanity check
# ----------------------------------------------------------------------------
def reference_forward(params, x, num_heads):
    B, S, input_dim = x.shape
    d_model = params["out_w"].shape[0]
    head_dim = d_model // num_heads
    qkv = x @ params["qkv_w"] + params["qkv_b"]
    qkv = qkv.reshape(B, S, num_heads, 3 * head_dim).transpose(0, 2, 1, 3)
    q, k, v = jnp.split(qkv, 3, axis=-1)
    scaled = jnp.einsum("bhqd,bhkd->bhqk", q, k) / math.sqrt(head_dim)
    attn = jax.nn.softmax(scaled, axis=-1)
    values = jnp.einsum("bhqk,bhkd->bhqd", attn, v)
    values = values.reshape(B, S, num_heads * head_dim)   # same plain reshape
    return values @ params["out_w"] + params["out_b"]


if __name__ == "__main__":
    # small shapes consistent with the module's forward
    batch, seq, input_dim = 2, 8, 32
    d_model, num_heads = 32, 4

    key = jax.random.PRNGKey(0)
    kx, kp = jax.random.split(key)
    x = jax.random.normal(kx, (batch, seq, input_dim), dtype=jnp.float32)
    params = init_mha_params(kp, input_dim, d_model)

    fwd = jax.jit(functools.partial(multi_head_attention_forward,
                                    num_heads=num_heads))
    out = jax.block_until_ready(fwd(params, x))

    ref = reference_forward(params, x, num_heads)
    assert out.shape == (batch, seq, d_model)
    # Tolerance covers bf16 matmul operands + the approximate EUP reciprocal.
    max_err = float(jnp.max(jnp.abs(out - ref)))
    assert jnp.allclose(out, ref, atol=5e-2, rtol=5e-2), max_err

    print("KERNEL_OK")
</pallas_src>

<mosaic_0001>
module attributes {stable_mosaic.version = 11 : i64} {
  func.func @_linear_kernel(%arg0: i32, %arg1: i32, %arg2: i32, %arg3: memref<16x32xbf16, #tpu.memory_space<vmem>>, %arg4: memref<32x32xbf16, #tpu.memory_space<vmem>>, %arg5: memref<1x32xf32, #tpu.memory_space<vmem>>, %arg6: memref<16x32xf32, #tpu.memory_space<vmem>>, %arg7: memref<16x32xf32, #tpu.memory_space<vmem>>) attributes {dimension_semantics = [#tpu.dimension_semantics<parallel>, #tpu.dimension_semantics<parallel>, #tpu.dimension_semantics<arbitrary>], iteration_bounds = array<i64: 1, 1, 1>, scalar_prefetch = 0 : i64, scratch_operands = 1 : i64, tpu.core_type = #tpu.core_type<tc>, window_params = [{transform_indices = @transform_0, window_bounds = array<i64: 16, 32>}, {transform_indices = @transform_1, window_bounds = array<i64: 32, 32>}, {transform_indices = @transform_2, window_bounds = array<i64: 1, 32>}, {transform_indices = @transform_3, window_bounds = array<i64: 16, 32>}]} {
    %c0_i32 = arith.constant 0 : i32
    %0 = arith.cmpi eq, %arg2, %c0_i32 : i32
    %1 = arith.extui %0 : i1 to i32
    %c0_i32_0 = arith.constant 0 : i32
    %2 = arith.cmpi ne, %1, %c0_i32_0 : i32
    scf.if %2 {
      %cst_10 = arith.constant 0.000000e+00 : f32
      %12 = vector.broadcast %cst_10 : f32 to vector<16x32xf32>
      %c0_11 = arith.constant 0 : index
      %c0_12 = arith.constant 0 : index
      %13 = vector.load %arg7[%c0_11, %c0_12] : memref<16x32xf32, #tpu.memory_space<vmem>>, vector<16x32xf32>
      tpu.vector_store %arg7[%c0_11, %c0_12], %12 {strides = array<i32>} : memref<16x32xf32, #tpu.memory_space<vmem>>, vector<16x32xf32>,
    } else {
    }
    %c0 = arith.constant 0 : index
    %c0_1 = arith.constant 0 : index
    %3 = vector.load %arg7[%c0, %c0_1] : memref<16x32xf32, #tpu.memory_space<vmem>>, vector<16x32xf32>
    %c0_2 = arith.constant 0 : index
    %c0_3 = arith.constant 0 : index
    %4 = vector.load %arg3[%c0_2, %c0_3] : memref<16x32xbf16, #tpu.memory_space<vmem>>, vector<16x32xbf16>
    %c0_4 = arith.constant 0 : index
    %c0_5 = arith.constant 0 : index
    %5 = vector.load %arg4[%c0_4, %c0_5] : memref<32x32xbf16, #tpu.memory_space<vmem>>, vector<32x32xbf16>
    %cst = arith.constant dense<0.000000e+00> : vector<16x32xf32>
    %6 = tpu.matmul %4, %5, %cst {dimension_numbers = #tpu.dot_dimension_numbers<[1], [0], [0], [1], [0, 0, 1, 1], [], []>} : vector<16x32xbf16>, vector<32x32xbf16>, vector<16x32xf32> -> vector<16x32xf32>
    %7 = arith.addf %3, %6 : vector<16x32xf32>
    %c0_6 = arith.constant 0 : index
    %c0_7 = arith.constant 0 : index
    %8 = vector.load %arg7[%c0_6, %c0_7] : memref<16x32xf32, #tpu.memory_space<vmem>>, vector<16x32xf32>
    tpu.vector_store %arg7[%c0_6, %c0_7], %7 {strides = array<i32>} : memref<16x32xf32, #tpu.memory_space<vmem>>, vector<16x32xf32>,
    %c0_i32_8 = arith.constant 0 : i32
    %9 = arith.cmpi eq, %arg2, %c0_i32_8 : i32
    %10 = arith.extui %9 : i1 to i32
    %c0_i32_9 = arith.constant 0 : i32
    %11 = arith.cmpi ne, %10, %c0_i32_9 : i32
    scf.if %11 {
      %c0_10 = arith.constant 0 : index
      %c0_11 = arith.constant 0 : index
      %12 = vector.load %arg7[%c0_10, %c0_11] : memref<16x32xf32, #tpu.memory_space<vmem>>, vector<16x32xf32>
      %c0_12 = arith.constant 0 : index
      %c0_13 = arith.constant 0 : index
      %13 = vector.load %arg5[%c0_12, %c0_13] : memref<1x32xf32, #tpu.memory_space<vmem>>, vector<1x32xf32>
      %14 = vector.broadcast %13 : vector<1x32xf32> to vector<16x32xf32>
      %15 = arith.addf %12, %14 : vector<16x32xf32>
      %c0_14 = arith.constant 0 : index
      %c0_15 = arith.constant 0 : index
      %16 = vector.load %arg6[%c0_14, %c0_15] : memref<16x32xf32, #tpu.memory_space<vmem>>, vector<16x32xf32>
      tpu.vector_store %arg6[%c0_14, %c0_15], %15 {strides = array<i32>} : memref<16x32xf32, #tpu.memory_space<vmem>>, vector<16x32xf32>,
    } else {
    }
    return
  }
  func.func @transform_0(%arg0: i32, %arg1: i32, %arg2: i32) -> (i32, i32) {
    %c0_i32 = arith.constant 0 : i32
    return %arg0, %arg2 : i32, i32
  }
  func.func @transform_1(%arg0: i32, %arg1: i32, %arg2: i32) -> (i32, i32) {
    %c0_i32 = arith.constant 0 : i32
    return %arg2, %arg1 : i32, i32
  }
  func.func @transform_2(%arg0: i32, %arg1: i32, %arg2: i32) -> (i32, i32) {
    %c0_i32 = arith.constant 0 : i32
    %c0_i32_0 = arith.constant 0 : i32
    return %c0_i32, %arg1 : i32, i32
  }
  func.func @transform_3(%arg0: i32, %arg1: i32, %arg2: i32) -> (i32, i32) {
    %c0_i32 = arith.constant 0 : i32
    return %arg0, %arg1 : i32, i32
  }
}

module attributes {stable_mosaic.version = 11 : i64} {
  func.func @_head_attention_kernel(%arg0: i32, %arg1: i32, %arg2: memref<1x8x32xbf16, #tpu.memory_space<vmem>>, %arg3: memref<1x32x24xbf16, #tpu.memory_space<vmem>>, %arg4: memref<1x1x24xf32, #tpu.memory_space<vmem>>, %arg5: memref<1x1x8x8xbf16, #tpu.memory_space<vmem>>) attributes {dimension_semantics = [#tpu.dimension_semantics<parallel>, #tpu.dimension_semantics<parallel>], iteration_bounds = array<i64: 2, 4>, scalar_prefetch = 0 : i64, scratch_operands = 0 : i64, tpu.core_type = #tpu.core_type<tc>, window_params = [{transform_indices = @transform_0, window_bounds = array<i64: 1, 8, 32>}, {transform_indices = @transform_1, window_bounds = array<i64: 1, 32, 24>}, {transform_indices = @transform_2, window_bounds = array<i64: 1, 1, 24>}, {transform_indices = @transform_3, window_bounds = array<i64: 1, 1, 8, 8>}]} {
    %c0 = arith.constant 0 : index
    %c0_0 = arith.constant 0 : index
    %c0_1 = arith.constant 0 : index
    %0 = vector.load %arg2[%c0, %c0_0, %c0_1] : memref<1x8x32xbf16, #tpu.memory_space<vmem>>, vector<1x8x32xbf16>
    %1 = vector.shape_cast %0 : vector<1x8x32xbf16> to vector<8x32xbf16>
    %c0_2 = arith.constant 0 : index
    %c0_3 = arith.constant 0 : index
    %c0_4 = arith.constant 0 : index
    %2 = vector.load %arg3[%c0_2, %c0_3, %c0_4] : memref<1x32x24xbf16, #tpu.memory_space<vmem>>, vector<1x32x24xbf16>
    %3 = vector.shape_cast %2 : vector<1x32x24xbf16> to vector<32x24xbf16>
    %c0_5 = arith.constant 0 : index
    %c0_6 = arith.constant 0 : index
    %c0_7 = arith.constant 0 : index
    %4 = vector.load %arg4[%c0_5, %c0_6, %c0_7] : memref<1x1x24xf32, #tpu.memory_space<vmem>>, vector<1x1x24xf32>
    %5 = vector.shape_cast %4 : vector<1x1x24xf32> to vector<1x24xf32>
    %cst = arith.constant dense<0.000000e+00> : vector<8x24xf32>
    %6 = tpu.matmul %1, %3, %cst {dimension_numbers = #tpu.dot_dimension_numbers<[1], [0], [0], [1], [0, 0, 1, 1], [], []>} : vector<8x32xbf16>, vector<32x24xbf16>, vector<8x24xf32> -> vector<8x24xf32>
    %7 = vector.broadcast %5 : vector<1x24xf32> to vector<8x24xf32>
    %8 = arith.addf %6, %7 : vector<8x24xf32>
    %9 = vector.extract_strided_slice %8 {offsets = [0, 0], sizes = [8, 8], strides = [1, 1]} : vector<8x24xf32> to vector<8x8xf32>
    %cst_8 = arith.constant 0.353553385 : f32
    %10 = vector.broadcast %cst_8 : f32 to vector<8x8xf32>
    %11 = arith.mulf %9, %10 : vector<8x8xf32>
    %12 = arith.truncf %11 : vector<8x8xf32> to vector<8x8xbf16>
    %13 = vector.extract_strided_slice %8 {offsets = [0, 8], sizes = [8, 8], strides = [1, 1]} : vector<8x24xf32> to vector<8x8xf32>
    %14 = arith.truncf %13 : vector<8x8xf32> to vector<8x8xbf16>
    %15 = vector.extract_strided_slice %8 {offsets = [0, 16], sizes = [8, 8], strides = [1, 1]} : vector<8x24xf32> to vector<8x8xf32>
    %16 = arith.truncf %15 : vector<8x8xf32> to vector<8x8xbf16>
    %cst_9 = arith.constant dense<0.000000e+00> : vector<8x8xf32>
    %17 = tpu.matmul %12, %14, %cst_9 {dimension_numbers = #tpu.dot_dimension_numbers<[1], [1], [0], [0], [0, 0, 1, 0], [], []>} : vector<8x8xbf16>, vector<8x8xbf16>, vector<8x8xf32> -> vector<8x8xf32>
    %cst_10 = arith.constant dense<0xFF800000> : vector<8xf32>
    %18 = vector.multi_reduction <maximumf>, %17, %cst_10 [1] : vector<8x8xf32> to vector<8xf32>
    %19 = vector.shape_cast %18 : vector<8xf32> to vector<8x1xf32>
    %20 = vector.broadcast %19 : vector<8x1xf32> to vector<8x8xf32>
    %21 = arith.subf %17, %20 : vector<8x8xf32>
    %22 = math.exp %21 : vector<8x8xf32>
    %cst_11 = arith.constant dense<0.000000e+00> : vector<8xf32>
    %23 = vector.multi_reduction <add>, %22, %cst_11 [1] : vector<8x8xf32> to vector<8xf32>
    %24 = vector.shape_cast %23 : vector<8xf32> to vector<8x1xf32>
    %25 = tpu.reciprocal %24 {approx = true} : vector<8x1xf32> -> vector<8x1xf32>
    %26 = vector.broadcast %25 : vector<8x1xf32> to vector<8x8xf32>
    %27 = arith.mulf %22, %26 : vector<8x8xf32>
    %28 = arith.truncf %27 : vector<8x8xf32> to vector<8x8xbf16>
    %cst_12 = arith.constant dense<0.000000e+00> : vector<8x8xf32>
    %29 = tpu.matmul %28, %16, %cst_12 {dimension_numbers = #tpu.dot_dimension_numbers<[1], [0], [0], [1], [0, 0, 1, 1], [], []>} : vector<8x8xbf16>, vector<8x8xbf16>, vector<8x8xf32> -> vector<8x8xf32>
    %30 = arith.truncf %29 : vector<8x8xf32> to vector<8x8xbf16>
    %c0_13 = arith.constant 0 : index
    %c0_14 = arith.constant 0 : index
    %c0_15 = arith.constant 0 : index
    %c0_16 = arith.constant 0 : index
    %31 = vector.load %arg5[%c0_13, %c0_14, %c0_15, %c0_16] : memref<1x1x8x8xbf16, #tpu.memory_space<vmem>>, vector<1x1x8x8xbf16>
    %32 = vector.shape_cast %31 : vector<1x1x8x8xbf16> to vector<8x8xbf16>
    %33 = vector.shape_cast %30 : vector<8x8xbf16> to vector<1x1x8x8xbf16>
    tpu.vector_store %arg5[%c0_13, %c0_14, %c0_15, %c0_16], %33 {strides = array<i32>} : memref<1x1x8x8xbf16, #tpu.memory_space<vmem>>, vector<1x1x8x8xbf16>,
    return
  }
  func.func @transform_0(%arg0: i32, %arg1: i32) -> (i32, i32, i32) {
    %c0_i32 = arith.constant 0 : i32
    %c0_i32_0 = arith.constant 0 : i32
    %c0_i32_1 = arith.constant 0 : i32
    return %arg0, %c0_i32, %c0_i32_0 : i32, i32, i32
  }
  func.func @transform_1(%arg0: i32, %arg1: i32) -> (i32, i32, i32) {
    %c0_i32 = arith.constant 0 : i32
    %c0_i32_0 = arith.constant 0 : i32
    %c0_i32_1 = arith.constant 0 : i32
    return %arg1, %c0_i32, %c0_i32_0 : i32, i32, i32
  }
  func.func @transform_2(%arg0: i32, %arg1: i32) -> (i32, i32, i32) {
    %c0_i32 = arith.constant 0 : i32
    %c0_i32_0 = arith.constant 0 : i32
    %c0_i32_1 = arith.constant 0 : i32
    return %arg1, %c0_i32, %c0_i32_0 : i32, i32, i32
  }
  func.func @transform_3(%arg0: i32, %arg1: i32) -> (i32, i32, i32, i32) {
    %c0_i32 = arith.constant 0 : i32
    %c0_i32_0 = arith.constant 0 : i32
    %c0_i32_1 = arith.constant 0 : i32
    return %arg0, %arg1, %c0_i32, %c0_i32_0 : i32, i32, i32, i32
  }
}

</mosaic_0001>

<llo_original>
// kernel: multi_head_attention_forward.3
$region0: #{multi_head_attention_forward.3}
  #allocation0 [shape = 'u32[]', space=smem, size = 0x4, offset = 0x4, fixed_abs, tag = 'smem constant byte address 0x4 - core index']
  #allocation1 [shape = 'u32[144,128]{1,0:T(1,128)}', space=vmem, size = 0x12000, scoped, tag = 'internal scratch']
  #allocation2 [shape = 'f32[16,32]{1,0:T(8,128)}', space=vmem, size = 0x2000, scoped, tag = 'scratch operand']
  %s0 = inlined_call_operand.vmem [shape: bf16[16,32], index: 0, kind: input, shape index: {}]
  %s1 = inlined_call_operand.vmem [shape: bf16[32,32], index: 1, kind: input, shape index: {}]
  %s2 = inlined_call_operand.vmem [shape: f32[1,32], index: 2, kind: input, shape index: {}]
  %s3 = inlined_call_operand.hbm [shape: f32[16,32], index: 3, kind: output, shape index: {}]
  %s4 = sld [smem:[#allocation0]]
  $region30: #{multi_head_attention_forward.3} parent=0
    _
  %s6 = ssub.s32 1, %s4
  %s7 = scalar_select 0, %s6, %s4
  $region1: #{multi_head_attention_forward.3} parent=0
    #allocation3 [shape = 'u8[8192]{0}', space=vmem, size = 0x2000, scoped, tag = 'output window, operand 0, single buffered']
    #allocation4 [shape = 's32[1]{0}', space=sflag, size = 0x4, scoped, tag = 'scoped memory for multi_head_attention_forward.3']
    %8 = vsyncpa [#allocation4], 0
    // Predicated region
    $region2: #{multi_head_attention_forward.3} parent=1 // pred_check
      _
    $region3: #{multi_head_attention_forward.3} parent=1 // pred_check_branch
      %10 = sbr.rel (0) target = $region5
    $region4: #{multi_head_attention_forward.3} parent=1 // pred_region
      _
    $region5: #{multi_head_attention_forward.3} parent=1 // pred_fallthru
      _
    // Predicated region
    $region6: #{multi_head_attention_forward.3} parent=1 // pred_check
      _
    $region7: #{multi_head_attention_forward.3} parent=1 // pred_check_branch
      %12 = sbr.rel (0) target = $region9
    $region8: #{multi_head_attention_forward.3} parent=1 // pred_region
      _
    $region9: #{multi_head_attention_forward.3} parent=1 // pred_fallthru
      _
    // Predicated region
    $region10: #{multi_head_attention_forward.3} parent=1 // pred_check
      _
    $region11: #{multi_head_attention_forward.3} parent=1 // pred_check_branch
      %14 = sbr.rel (0) target = $region13
    $region12: #{multi_head_attention_forward.3} parent=1 // pred_region
      _
    $region13: #{multi_head_attention_forward.3} parent=1 // pred_fallthru
      _
    %p16 = scmp.eq.s32.totalorder 0, 0
    // Predicated region
    $region14: #{multi_head_attention_forward.3} parent=1 // pred_check
      %p17 = pneg %p16
    $region15: #{multi_head_attention_forward.3} parent=1 // pred_check_branch
      %19 = sbr.rel (%p17) target = $region17
    $region16: #{multi_head_attention_forward.3} parent=1 // pred_region
      %vm20 = vcmask 261120
      %21 = vst.msk [vmem:[#allocation2] sm:$0xff] %vm20, 0.0
      %22 = vst.msk [vmem:[#allocation2 + $0x8] sm:$0xff] %vm20, 0.0
    $region17: #{multi_head_attention_forward.3} parent=1 // pred_fallthru
      _
    %v23 = vld [vmem:[#allocation2] sm:$0xff]
    %v24 = vld [vmem:[#allocation2 + $0x8] sm:$0xff]
    %v25 = vld [vmem:[%s0] sm:$0xf]
    %v26 = vld [vmem:[%s0 + $0x4] sm:$0xf]
    %v27 = vld [vmem:[%s1] sm:$0xf]
    %v28 = vld [vmem:[%s1 + $0x4] sm:$0xf]
    %v29 = vld [vmem:[%s1 + $0x8] sm:$0xf]
    %v30 = vld [vmem:[%s1 + $0xc] sm:$0xf]
    %v33 = vunpack.c.l.b16 %v25
    %v34 = vunpack.c.l.b16 %v26
    %v35 = vpack.c.b16 %v34, %v33
    %v40 = vunpack.c.l.b16 %v27
    %v41 = vunpack.c.l.b16 %v28
    %v42 = vunpack.c.l.b16 %v29
    %v43 = vunpack.c.l.b16 %v30
    %v44 = vpack.c.b16 %v41, %v40
    %v45 = vpack.c.b16 %v43, %v42
    %vm48 = vcmask 261120
    %v50 = vsel %vm48, %v35, 0
    %52 = vmatprep.subr.bf16.mxu0 0
    %53 = vmatpush1.bf16.msra.mxu0 %v44
    %54 = vmatprep.subr.bf16.mxu0 0
    %55 = vmatpush1.bf16.msra.mxu0 %v45
    %56 = vmatprep.subr.bf16.mxu0 0
    %57 = vmatpush1.bf16.msra.mxu0 0
    %58 = vmatprep.subr.bf16.mxu0 0
    %59 = vmatpush1.bf16.msra.mxu0 0
    %60 = vmatprep.subr.bf16.mxu0 0
    %61 = vmatpush1.bf16.msra.mxu0 0
    %62 = vmatprep.subr.bf16.mxu0 0
    %63 = vmatpush1.bf16.msra.mxu0 0
    %64 = vmatprep.subr.bf16.mxu0 0
    %65 = vmatpush1.bf16.msra.mxu0 0
    %66 = vmatprep.subr.bf16.mxu0 0
    %67 = vmatpush1.bf16.msra.mxu0 0
    %68 = vmatprep.subr.bf16.mxu0 0
    %69 = vmatpush1.bf16.msra.mxu0 0
    %70 = vmatprep.subr.bf16.mxu0 0
    %71 = vmatpush1.bf16.msra.mxu0 0
    %72 = vmatprep.subr.bf16.mxu0 0
    %73 = vmatpush1.bf16.msra.mxu0 0
    %74 = vmatprep.subr.bf16.mxu0 0
    %75 = vmatpush1.bf16.msra.mxu0 0
    %76 = vmatprep.subr.bf16.mxu0 0
    %77 = vmatpush1.bf16.msra.mxu0 0
    %78 = vmatprep.subr.bf16.mxu0 0
    %79 = vmatpush1.bf16.msra.mxu0 0
    %80 = vmatprep.subr.bf16.mxu0 0
    %81 = vmatpush1.bf16.msra.mxu0 0
    %82 = vmatprep.subr.bf16.mxu0 0
    %83 = vmatpush1.bf16.msra.mxu0 0
    %84 = vmatprep.mubr.bf16.mxu0 0
    %85 = vmatmul.mubr.bf16.gmra.mrb[0].mxu0 %v50
    %v86 = vpop.f32.mrb[0].mxu0
    %v87 = vadd.f32 0.0, %v86
    %v88 = vpop.f32.mrb[0].mxu0
    %v89 = vpop.f32.mrb[0].mxu0
    %v90 = vadd.f32 0.0, %v89
    %v91 = vpop.f32.mrb[0].mxu0
    %92 = vdwg.mxu0
    %v93 = vadd.f32 %v23, %v87
    %v94 = vadd.f32 %v24, %v90
    %95 = vst.msk [vmem:[#allocation2] sm:$0xff] %vm48, %v93
    %96 = vst.msk [vmem:[#allocation2 + $0x8] sm:$0xff] %vm48, %v94
    // Predicated region
    $region18: #{multi_head_attention_forward.3} parent=1 // pred_check
      %p97 = pneg %p16
    $region19: #{multi_head_attention_forward.3} parent=1 // pred_check_branch
      %99 = sbr.rel (%p97) target = $region21
    $region20: #{multi_head_attention_forward.3} parent=1 // pred_region
      %v100 = vld [vmem:[#allocation2] sm:$0xff]
      %v101 = vld [vmem:[#allocation2 + $0x8] sm:$0xff]
      %v102 = vld [vmem:[%s2] sm:$0x1]
      %v104 = vlaneseq
      %v105 = vshrl.u32 %v104, 7
      %v106 = vsub.s32 0, %v105
      %v107 = vrot.slane %v102, %v106
      %v109 = vadd.f32 %v100, %v107
      %v110 = vadd.f32 %v101, %v107
      %111 = vst.msk [vmem:[#allocation3] sm:$0xff] %vm48, %v109
      %112 = vst.msk [vmem:[#allocation3 + $0x8] sm:$0xff] %vm48, %v110
    $region21: #{multi_head_attention_forward.3} parent=1 // pred_fallthru
      _
    // Predicated region
    $region22: #{multi_head_attention_forward.3} parent=1 // pred_check
      _
    $region23: #{multi_head_attention_forward.3} parent=1 // pred_check_branch
      %114 = sbr.rel (0) target = $region25
    $region24: #{multi_head_attention_forward.3} parent=1 // pred_region
      %s116 = ssub.s32 256, 256
      %117 = vsyncadd [#allocation4], %s116
      %s118 = sshll.u32 [#allocation3], 4
      %s119 = int_to_ptr.vmem [resolvable:$true] %s118
      %124 = dma.vmem_to_hbm [thread:$0]  %s119, 256, %s3, [#allocation4], 128, 128, 8
    $region25: #{multi_head_attention_forward.3} parent=1 // pred_fallthru
      _
    // Predicated region
    $region26: #{multi_head_attention_forward.3} parent=1 // pred_check
      _
    $region27: #{multi_head_attention_forward.3} parent=1 // pred_check_branch
      %126 = sbr.rel (0) target = $region29
    $region28: #{multi_head_attention_forward.3} parent=1 // pred_region
      %127 = dma.done [#allocation4], 256
    $region29: #{multi_head_attention_forward.3} parent=1 // pred_fallthru
      _
    %128 = vsyncpa [#allocation4], 1

// kernel: multi_head_attention_forward.2
$region0: #{multi_head_attention_forward.2}
  #allocation0 [shape = 'u32[]', space=smem, size = 0x4, offset = 0x4, fixed_abs, tag = 'smem constant byte address 0x4 - core index']
  #allocation1 [shape = 'u32[144,128]{1,0:T(1,128)}', space=vmem, size = 0x12000, scoped, tag = 'internal scratch']
  %s0 = inlined_call_operand.vmem [shape: bf16[2,8,32], index: 0, kind: input, shape index: {}]
  %s1 = inlined_call_operand.vmem [shape: bf16[4,32,24], index: 1, kind: input, shape index: {}]
  %s2 = inlined_call_operand.vmem [shape: f32[4,1,24], index: 2, kind: input, shape index: {}]
  %s3 = inlined_call_operand.vmem [shape: bf16[2,4,8,8], index: 3, kind: output, shape index: {}]
  %s4 = sld [smem:[#allocation0]]
  $region45: #{multi_head_attention_forward.2} parent=0
    _
  %s6 = ssub.s32 1, %s4
  %s7 = scalar_select 0, %s6, %s4
  loop: start=0, step=1, limit=10
  $region2: #{multi_head_attention_forward.2} parent=0 // loop_pre_header
    _
  $region3: #{multi_head_attention_forward.2} parent=0 // loop_header
    %s9 = sphi 0, %s13
    %p10 = scmp.ge.s32.totalorder %s9, 10
    %s16 = sphi 0, %s28
    %s17 = sphi 0, %s24
    %s18 = sphi 0, %s16
    %s19 = sphi 0, %s17
    %s20 = sphi 0, %s18
    %s21 = sphi 0, %s19
    %s31 = sphi 0, %s33
    %s34 = sphi 0, %s31
    %s35 = sphi 0, %s34
    %s51 = sphi 0, %s35
    %s57 = sphi 0, %s59
    %s60 = sphi 0, %s57
    %s61 = sphi 0, %s60
    %s77 = sphi 0, %s61
    %s83 = sphi 0, %s85
    %s86 = sphi 0, %s83
    %s87 = sphi 0, %s86
    %s103 = sphi 0, %s87
    %s111 = sphi 0, %s113
    %s114 = sphi 0, %s111
    %s115 = sphi 0, %s114
    %s131 = sphi 0, %s115
  $region4: #{multi_head_attention_forward.2} parent=0 // loop_header_branch
    %12 = sbr.rel (%p10) target = $region8
  $region5: #{multi_head_attention_forward.2} parent=0 // loop_body
    %s14 = ssub.s32 %s9, 1
    %s15 = ssub.s32 %s9, 2
    %s22 = sadd.s32 1, %s17
    %p23 = scmp.ge.s32.totalorder %s22, 4
    %s24 = scalar_select %p23, 0, %s22
    %s25 = sadd.s32 1, %s16
    %s26 = scalar_select %p23, %s25, %s16
    %p27 = scmp.ge.s32.totalorder %s26, 2
    %s28 = scalar_select %p27, 0, %s26
    %s29 = ssub.s32 %s16, %s28
    %p30 = scmp.eq.s32.totalorder %s29, 0
    %s32 = sadd.s32 %s31, 1
    %s33 = scalar_select %p30, %s31, %s32
    %p36 = pneg %p30
    %p37 = scmp.eq.s32.totalorder %s9, 7
    %p38 = por %p36, %p37
    %p39 = scmp.ne.s32.totalorder %s31, %s34
    %p40 = scmp.eq.s32.totalorder %s9, 0
    %p41 = por %p39, %p40
    %p42 = scmp.ne.s32.totalorder %s31, %s34
    %p43 = scmp.eq.s32.totalorder %s14, 7
    %p44 = por %p42, %p43
    %p45 = scmp.ne.s32.totalorder %s34, %s35
    %p46 = scmp.eq.s32.totalorder %s14, 0
    %p47 = por %p45, %p46
    %p48 = scmp.ne.s32.totalorder %s34, %s35
    %p49 = scmp.eq.s32.totalorder %s15, 7
    %p50 = por %p48, %p49
    %p52 = scmp.ne.s32.totalorder %s35, %s51
    %p53 = scmp.eq.s32.totalorder %s15, 0
    %p54 = por %p52, %p53
    %s55 = ssub.s32 %s17, %s24
    %p56 = scmp.eq.s32.totalorder %s55, 0
    %s58 = sadd.s32 %s57, 1
    %s59 = scalar_select %p56, %s57, %s58
    %p62 = pneg %p56
    %p63 = scmp.eq.s32.totalorder %s9, 7
    %p64 = por %p62, %p63
    %p65 = scmp.ne.s32.totalorder %s57, %s60
    %p66 = scmp.eq.s32.totalorder %s9, 0
    %p67 = por %p65, %p66
    %p68 = scmp.ne.s32.totalorder %s57, %s60
    %p69 = scmp.eq.s32.totalorder %s14, 7
    %p70 = por %p68, %p69
    %p71 = scmp.ne.s32.totalorder %s60, %s61
    %p72 = scmp.eq.s32.totalorder %s14, 0
    %p73 = por %p71, %p72
    %p74 = scmp.ne.s32.totalorder %s60, %s61
    %p75 = scmp.eq.s32.totalorder %s15, 7
    %p76 = por %p74, %p75
    %p78 = scmp.ne.s32.totalorder %s61, %s77
    %p79 = scmp.eq.s32.totalorder %s15, 0
    %p80 = por %p78, %p79
    %s81 = ssub.s32 %s17, %s24
    %p82 = scmp.eq.s32.totalorder %s81, 0
    %s84 = sadd.s32 %s83, 1
    %s85 = scalar_select %p82, %s83, %s84
    %p88 = pneg %p82
    %p89 = scmp.eq.s32.totalorder %s9, 7
    %p90 = por %p88, %p89
    %p91 = scmp.ne.s32.totalorder %s83, %s86
    %p92 = scmp.eq.s32.totalorder %s9, 0
    %p93 = por %p91, %p92
    %p94 = scmp.ne.s32.totalorder %s83, %s86
    %p95 = scmp.eq.s32.totalorder %s14, 7
    %p96 = por %p94, %p95
    %p97 = scmp.ne.s32.totalorder %s86, %s87
    %p98 = scmp.eq.s32.totalorder %s14, 0
    %p99 = por %p97, %p98
    %p100 = scmp.ne.s32.totalorder %s86, %s87
    %p101 = scmp.eq.s32.totalorder %s15, 7
    %p102 = por %p100, %p101
    %p104 = scmp.ne.s32.totalorder %s87, %s103
    %p105 = scmp.eq.s32.totalorder %s15, 0
    %p106 = por %p104, %p105
    %s107 = ssub.s32 %s16, %s28
    %s108 = ssub.s32 %s17, %s24
    %s109 = sor.u32 %s107, %s108
    %p110 = scmp.eq.s32.totalorder %s109, 0
    %s112 = sadd.s32 %s111, 1
    %s113 = scalar_select %p110, %s111, %s112
    %p116 = pneg %p110
    %p117 = scmp.eq.s32.totalorder %s9, 7
    %p118 = por %p116, %p117
    %p119 = scmp.ne.s32.totalorder %s111, %s114
    %p120 = scmp.eq.s32.totalorder %s9, 0
    %p121 = por %p119, %p120
    %p122 = scmp.ne.s32.totalorder %s111, %s114
    %p123 = scmp.eq.s32.totalorder %s14, 7
    %p124 = por %p122, %p123
    %p125 = scmp.ne.s32.totalorder %s114, %s115
    %p126 = scmp.eq.s32.totalorder %s14, 0
    %p127 = por %p125, %p126
    %p128 = scmp.ne.s32.totalorder %s114, %s115
    %p129 = scmp.eq.s32.totalorder %s15, 7
    %p130 = por %p128, %p129
    %p132 = scmp.ne.s32.totalorder %s115, %s131
    %p133 = scmp.eq.s32.totalorder %s15, 0
    %p134 = por %p132, %p133
    %p135 = scmp.le.s32.totalorder 1, %s9
    %p136 = scmp.lt.s32.totalorder %s9, 9
    %p137 = pnand %p135, %p136
    %p138 = pneg %p137
    // Predicated region
    $region9: #{multi_head_attention_forward.2} parent=5 // pred_check
      _
    $region10: #{multi_head_attention_forward.2} parent=5 // pred_check_branch
      %140 = sbr.rel (%p137) target = $region12
    $region11: #{multi_head_attention_forward.2} parent=5 // pred_region
      %s141 = ssub.s32 %s9, 1
    $region12: #{multi_head_attention_forward.2} parent=5 // pred_fallthru
      _
    %p142 = scmp.lt.s32.totalorder %s9, 8
    // Predicated region
    $region13: #{multi_head_attention_forward.2} parent=5 // pred_check
      %p143 = pneg %p142
    $region14: #{multi_head_attention_forward.2} parent=5 // pred_check_branch
      %145 = sbr.rel (%p143) target = $region16
    $region15: #{multi_head_attention_forward.2} parent=5 // pred_region
      // Predicated region
      $region17: #{multi_head_attention_forward.2} parent=15 // pred_check
        %p146 = pneg %p41
      $region18: #{multi_head_attention_forward.2} parent=15 // pred_check_branch
        %148 = sbr.rel (%p146) target = $region20
      $region19: #{multi_head_attention_forward.2} parent=15 // pred_region
        %p149 = scmp.lt.s32.totalorder %s16, 1
        %s150 = scalar_select %p149, %s16, 1
        %s151 = smul.addr %s150, 4
        %s152 = scalar_lea.vmem %s0, %s151
      $region20: #{multi_head_attention_forward.2} parent=15 // pred_fallthru
        _
      // Predicated region
      $region21: #{multi_head_attention_forward.2} parent=15 // pred_check
        %p153 = pneg %p67
      $region22: #{multi_head_attention_forward.2} parent=15 // pred_check_branch
        %155 = sbr.rel (%p153) target = $region24
      $region23: #{multi_head_attention_forward.2} parent=15 // pred_region
        %p156 = scmp.lt.s32.totalorder %s17, 3
        %s157 = scalar_select %p156, %s17, 3
        %s158 = smul.addr %s157, 4
        %s159 = smul.addr %s158, 4
        %s160 = scalar_lea.vmem %s1, %s159
      $region24: #{multi_head_attention_forward.2} parent=15 // pred_fallthru
        _
      // Predicated region
      $region25: #{multi_head_attention_forward.2} parent=15 // pred_check
        %p161 = pneg %p93
      $region26: #{multi_head_attention_forward.2} parent=15 // pred_check_branch
        %163 = sbr.rel (%p161) target = $region28
      $region27: #{multi_head_attention_forward.2} parent=15 // pred_region
        %p164 = scmp.lt.s32.totalorder %s17, 3
        %s165 = scalar_select %p164, %s17, 3
        %s166 = scalar_lea.vmem %s2, %s165
      $region28: #{multi_head_attention_forward.2} parent=15 // pred_fallthru
        _
    $region16: #{multi_head_attention_forward.2} parent=5 // pred_fallthru
      _
    %p167 = scmp.le.s32.totalorder 1, %s9
    %p168 = scmp.lt.s32.totalorder %s9, 9
    %p169 = pnand %p167, %p168
    %p170 = pneg %p169
    // Predicated region
    $region29: #{multi_head_attention_forward.2} parent=5 // pred_check
      _
    $region30: #{multi_head_attention_forward.2} parent=5 // pred_check_branch
      %172 = sbr.rel (%p169) target = $region32
    $region31: #{multi_head_attention_forward.2} parent=5 // pred_region
      %s173 = ssub.s32 %s9, 1
      %p174 = scmp.lt.s32.totalorder %s18, 1
      %s175 = scalar_select %p174, %s18, 1
      %s176 = smul.addr %s175, 4
      %s177 = scalar_lea.vmem %s0, %s176
      %p178 = pneg %p47
      %p179 = pneg %p44
      %p180 = scmp.lt.s32.totalorder %s19, 3
      %s181 = scalar_select %p180, %s19, 3
      %s182 = smul.addr %s181, 4
      %s183 = smul.addr %s182, 4
      %s184 = scalar_lea.vmem %s1, %s183
      %p185 = pneg %p73
      %p186 = pneg %p70
      %p187 = scmp.lt.s32.totalorder %s19, 3
      %s188 = scalar_select %p187, %s19, 3
      %s189 = scalar_lea.vmem %s2, %s188
      %p190 = pneg %p99
      %p191 = pneg %p96
      %p192 = pneg %p127
      %p193 = pneg %p124
      %p194 = scmp.lt.s32.totalorder %s18, 1
      %s195 = scalar_select %p194, %s18, 1
      %p196 = scmp.lt.s32.totalorder %s19, 3
      %s197 = scalar_select %p196, %s19, 3
      %s198 = smul.addr %s195, 4
      %s199 = sadd.s32 %s197, %s198
      %s200 = smul.addr %s199, 4
      %s201 = scalar_lea.vmem %s3, %s200
      %p202 = scmp.lt.s32.totalorder %s18, 1
      %s203 = scalar_select %p202, %s18, 1
      %s204 = smul.addr %s203, 4
      %s205 = scalar_lea.vmem %s0, %s204
      %p206 = scmp.lt.s32.totalorder %s19, 3
      %s207 = scalar_select %p206, %s19, 3
      %s208 = smul.addr %s207, 4
      %s209 = smul.addr %s208, 4
      %s210 = scalar_lea.vmem %s1, %s209
      %p211 = scmp.lt.s32.totalorder %s19, 3
      %s212 = scalar_select %p211, %s19, 3
      %s213 = scalar_lea.vmem %s2, %s212
      %p214 = scmp.lt.s32.totalorder %s18, 1
      %s215 = scalar_select %p214, %s18, 1
      %p216 = scmp.lt.s32.totalorder %s19, 3
      %s217 = scalar_select %p216, %s19, 3
      %s218 = smul.addr %s215, 4
      %s219 = sadd.s32 %s217, %s218
      %s220 = smul.addr %s219, 4
      %s221 = scalar_lea.vmem %s3, %s220
      %v223 = vld [vmem:[%s205] sm:$0xf]
      %v224 = vld [vmem:[%s210] sm:$0xf]
      %v225 = vld [vmem:[%s210 + $0x4] sm:$0xf]
      %v226 = vld [vmem:[%s210 + $0x8] sm:$0xf]
      %v227 = vld [vmem:[%s210 + $0xc] sm:$0xf]
      %v228 = vld [vmem:[%s213] sm:$0x1]
      %v230 = vlaneseq
      %v231 = vshrl.u32 %v230, 7
      %v232 = vsub.s32 0, %v231
      %v233 = vrot.slane %v228, %v232
      %v239 = vunpack.c.l.b16 %v224
      %v240 = vunpack.c.l.b16 %v225
      %v241 = vunpack.c.l.b16 %v226
      %v242 = vunpack.c.l.b16 %v227
      %v243 = vpack.c.b16 %v240, %v239
      %v244 = vpack.c.b16 %v242, %v241
      %vm247 = vcmask 261120
      %v249 = vsel %vm247, %v223, 0
      %251 = vmatprep.subr.bf16.mxu0 0
      %252 = vmatpush1.bf16.msra.mxu0 %v243
      %253 = vmatprep.subr.bf16.mxu0 0
      %254 = vmatpush1.bf16.msra.mxu0 %v244
      %255 = vmatprep.subr.bf16.mxu0 0
      %256 = vmatpush1.bf16.msra.mxu0 0
      %257 = vmatprep.subr.bf16.mxu0 0
      %258 = vmatpush1.bf16.msra.mxu0 0
      %259 = vmatprep.subr.bf16.mxu0 0
      %260 = vmatpush1.bf16.msra.mxu0 0
      %261 = vmatprep.subr.bf16.mxu0 0
      %262 = vmatpush1.bf16.msra.mxu0 0
      %263 = vmatprep.subr.bf16.mxu0 0
      %264 = vmatpush1.bf16.msra.mxu0 0
      %265 = vmatprep.subr.bf16.mxu0 0
      %266 = vmatpush1.bf16.msra.mxu0 0
      %267 = vmatprep.subr.bf16.mxu0 0
      %268 = vmatpush1.bf16.msra.mxu0 0
      %269 = vmatprep.subr.bf16.mxu0 0
      %270 = vmatpush1.bf16.msra.mxu0 0
      %271 = vmatprep.subr.bf16.mxu0 0
      %272 = vmatpush1.bf16.msra.mxu0 0
      %273 = vmatprep.subr.bf16.mxu0 0
      %274 = vmatpush1.bf16.msra.mxu0 0
      %275 = vmatprep.subr.bf16.mxu0 0
      %276 = vmatpush1.bf16.msra.mxu0 0
      %277 = vmatprep.subr.bf16.mxu0 0
      %278 = vmatpush1.bf16.msra.mxu0 0
      %279 = vmatprep.subr.bf16.mxu0 0
      %280 = vmatpush1.bf16.msra.mxu0 0
      %281 = vmatprep.subr.bf16.mxu0 0
      %282 = vmatpush1.bf16.msra.mxu0 0
      %283 = vmatprep.mubr.bf16.mxu0 0
      %284 = vmatmul.mubr.bf16.gmra.mrb[0].mxu0 %v249
      %v285 = vpop.f32.mrb[0].mxu0
      %v286 = vadd.f32 %v233, %v285
      %v287 = vpop.f32.mrb[0].mxu0
      %v288 = vpop.f32.mrb[0].mxu0
      %v289 = vpop.f32.mrb[0].mxu0
      %290 = vdwg.mxu0
      %v291 = vmul.f32 %v286, 0.35355338
      %v292 = vpack.c.bf16 %v291, %v291
      %v293 = vpack.c.bf16 %v286, %v286
      %295 = vrot.lane.b32.xlu0 %v293, 120
      %v296 = vpop.permute.xlu0 %295
      %vm297 = vcmask 64512
      %v299 = vsel %vm297, %v292, 0
      %v302 = vsel %vm297, %v296, 0
      %304 = vmatprep.subr.bf16.mxu0 0
      %305 = vmatpush1.bf16.xpose.msra.mxu0 %v302
      %306 = vmatprep.subr.bf16.mxu0 0
      %307 = vmatpush1.bf16.xpose.msra.mxu0 0
      %308 = vmatprep.subr.bf16.mxu0 0
      %309 = vmatpush1.bf16.xpose.msra.mxu0 0
      %310 = vmatprep.subr.bf16.mxu0 0
      %311 = vmatpush1.bf16.xpose.msra.mxu0 0
      %312 = vmatprep.subr.bf16.mxu0 0
      %313 = vmatpush1.bf16.xpose.msra.mxu0 0
      %314 = vmatprep.subr.bf16.mxu0 0
      %315 = vmatpush1.bf16.xpose.msra.mxu0 0
      %316 = vmatprep.subr.bf16.mxu0 0
      %317 = vmatpush1.bf16.xpose.msra.mxu0 0
      %318 = vmatprep.subr.bf16.mxu0 0
      %319 = vmatpush1.bf16.xpose.msra.mxu0 0
      %320 = vmatprep.subr.bf16.mxu0 0
      %321 = vmatpush1.bf16.xpose.msra.mxu0 0
      %322 = vmatprep.subr.bf16.mxu0 0
      %323 = vmatpush1.bf16.xpose.msra.mxu0 0
      %324 = vmatprep.subr.bf16.mxu0 0
      %325 = vmatpush1.bf16.xpose.msra.mxu0 0
      %326 = vmatprep.subr.bf16.mxu0 0
      %327 = vmatpush1.bf16.xpose.msra.mxu0 0
      %328 = vmatprep.subr.bf16.mxu0 0
      %329 = vmatpush1.bf16.xpose.msra.mxu0 0
      %330 = vmatprep.subr.bf16.mxu0 0
      %331 = vmatpush1.bf16.xpose.msra.mxu0 0
      %332 = vmatprep.subr.bf16.mxu0 0
      %333 = vmatpush1.bf16.xpose.msra.mxu0 0
      %334 = vmatprep.subr.bf16.mxu0 0
      %335 = vmatpush1.bf16.xpose.msra.mxu0 0
      %336 = vmatprep.mubr.bf16.mxu0 0
      %337 = vmatmul.mubr.bf16.gmra.mrb[0].mxu0 %v299
      %v338 = vpop.f32.mrb[0].mxu0
      %v339 = vadd.f32 0.0, %v338
      %v340 = vpop.f32.mrb[0].mxu0
      %v341 = vpop.f32.mrb[0].mxu0
      %v342 = vpop.f32.mrb[0].mxu0
      %343 = vdwg.mxu0
      %v344 = vsel %vm297, %v339, -inf
      %345 = vmax.xlane.f32.xlu0 %v344
      %v346 = vpop.xlane.xlu0 %345
      %v347 = vsub.f32 %v339, %v346
      %v348 = vmul.f32 %v347, 1.442695
      %v349 = vpow.pop %v348
      %v350 = vsel %vm297, %v349, 0.0
      %351 = vadd.xlane.f32.xlu0 %v350
      %v352 = vpop.xlane.xlu0 %351
      %v353 = vrcp.pop %v352
      %v354 = vmul.f32 %v349, %v353
      %v355 = vpack.c.bf16 %v354, %v354
      %356 = vrot.lane.b32.xlu0 %v293, 112
      %v357 = vpop.permute.xlu0 %356
      %v359 = vsel %vm297, %v355, 0
      %vm361 = vcmask 1043456
      %v363 = vsel %vm361, %v357, 0
      %365 = vmatprep.subr.bf16.mxu0 0
      %366 = vmatpush1.bf16.msra.mxu0 %v363
      %367 = vmatprep.subr.bf16.mxu0 0
      %368 = vmatpush1.bf16.msra.mxu0 0
      %369 = vmatprep.subr.bf16.mxu0 0
      %370 = vmatpush1.bf16.msra.mxu0 0
      %371 = vmatprep.subr.bf16.mxu0 0
      %372 = vmatpush1.bf16.msra.mxu0 0
      %373 = vmatprep.subr.bf16.mxu0 0
      %374 = vmatpush1.bf16.msra.mxu0 0
      %375 = vmatprep.subr.bf16.mxu0 0
      %376 = vmatpush1.bf16.msra.mxu0 0
      %377 = vmatprep.subr.bf16.mxu0 0
      %378 = vmatpush1.bf16.msra.mxu0 0
      %379 = vmatprep.subr.bf16.mxu0 0
      %380 = vmatpush1.bf16.msra.mxu0 0
      %381 = vmatprep.subr.bf16.mxu0 0
      %382 = vmatpush1.bf16.msra.mxu0 0
      %383 = vmatprep.subr.bf16.mxu0 0
      %384 = vmatpush1.bf16.msra.mxu0 0
      %385 = vmatprep.subr.bf16.mxu0 0
      %386 = vmatpush1.bf16.msra.mxu0 0
      %387 = vmatprep.subr.bf16.mxu0 0
      %388 = vmatpush1.bf16.msra.mxu0 0
      %389 = vmatprep.subr.bf16.mxu0 0
      %390 = vmatpush1.bf16.msra.mxu0 0
      %391 = vmatprep.subr.bf16.mxu0 0
      %392 = vmatpush1.bf16.msra.mxu0 0
      %393 = vmatprep.subr.bf16.mxu0 0
      %394 = vmatpush1.bf16.msra.mxu0 0
      %395 = vmatprep.subr.bf16.mxu0 0
      %396 = vmatpush1.bf16.msra.mxu0 0
      %397 = vmatprep.mubr.bf16.mxu0 0
      %398 = vmatmul.mubr.bf16.gmra.mrb[0].mxu0 %v359
      %v399 = vpop.f32.mrb[0].mxu0
      %v400 = vadd.f32 0.0, %v399
      %v401 = vpop.f32.mrb[0].mxu0
      %v402 = vpop.f32.mrb[0].mxu0
      %v403 = vpop.f32.mrb[0].mxu0
      %404 = vdwg.mxu0
      %v405 = vpack.c.bf16 %v400, %v400
      %vm406 = vcmask 60416
      %407 = vst.msk [vmem:[%s221] sm:$0xf] %vm406, %v405
      %p408 = scmp.lt.s32.totalorder %s18, 1
      %s409 = scalar_select %p408, %s18, 1
      %p410 = scmp.lt.s32.totalorder %s19, 3
      %s411 = scalar_select %p410, %s19, 3
      %s412 = smul.addr %s409, 4
      %s413 = sadd.s32 %s411, %s412
      %s414 = smul.addr %s413, 4
      %s415 = scalar_lea.vmem %s3, %s414
      // Predicated region
      $region33: #{multi_head_attention_forward.2} parent=31 // pred_check
        %p416 = pneg %p124
      $region34: #{multi_head_attention_forward.2} parent=31 // pred_check_branch
        %418 = sbr.rel (%p416) target = $region36
      $region35: #{multi_head_attention_forward.2} parent=31 // pred_region
        _
      $region36: #{multi_head_attention_forward.2} parent=31 // pred_fallthru
        _
    $region32: #{multi_head_attention_forward.2} parent=5 // pred_fallthru
      _
    %p419 = scmp.le.s32.totalorder 2, %s9
    // Predicated region
    $region37: #{multi_head_attention_forward.2} parent=5 // pred_check
      %p420 = pneg %p419
    $region38: #{multi_head_attention_forward.2} parent=5 // pred_check_branch
      %422 = sbr.rel (%p420) target = $region40
    $region39: #{multi_head_attention_forward.2} parent=5 // pred_region
      %s423 = ssub.s32 %s9, 2
      // Predicated region
      $region41: #{multi_head_attention_forward.2} parent=39 // pred_check
        %p424 = pneg %p130
      $region42: #{multi_head_attention_forward.2} parent=39 // pred_check_branch
        %426 = sbr.rel (%p424) target = $region44
      $region43: #{multi_head_attention_forward.2} parent=39 // pred_region
        %p427 = scmp.lt.s32.totalorder %s20, 1
        %s428 = scalar_select %p427, %s20, 1
        %p429 = scmp.lt.s32.totalorder %s21, 3
        %s430 = scalar_select %p429, %s21, 3
        %s431 = smul.addr %s428, 4
        %s432 = sadd.s32 %s430, %s431
        %s433 = smul.addr %s432, 4
        %s434 = scalar_lea.vmem %s3, %s433
      $region44: #{multi_head_attention_forward.2} parent=39 // pred_fallthru
        _
    $region40: #{multi_head_attention_forward.2} parent=5 // pred_fallthru
      _
  $region6: #{multi_head_attention_forward.2} parent=0 // loop_footer
    %s13 = sadd.s32 1, %s9
  $region7: #{multi_head_attention_forward.2} parent=0 // loop_footer_branch
    %8 = sbr.rel target = $region3
  $region8: #{multi_head_attention_forward.2} parent=0 // loop_exit
    _

</llo_original>
